<compile_context>
chip_gen: v5e
topology: v5e:2x2
jax: 0.10.0
libtpu: 0.0.40
codegen_flags: <defaults>
</compile_context>

<pallas_src>
import functools

import jax
import jax.numpy as jnp
from jax.experimental import pallas as pl
from jax.experimental.pallas import tpu as pltpu


def _lstm_kernel(x_ref,        # (T*B, D)  time-major, flattened
                 w_all_ref,    # (D, 4H)   fused gate weights  [i | f | o | g]
                 u_all_ref,    # (H, 4H)   fused recurrent weights
                 b_all_ref,    # (1, 4H)   fused gate biases
                 wout_ref,     # (H, O)
                 bout_ref,     # (1, O)
                 y_ref,        # (B, O)
                 *, T, B, H):
    u_all = u_all_ref[...]

    # Hoisted, time-independent input projection with the gate biases folded
    # in: one large MXU matmul instead of 4 small ones per time step.
    xw = (jnp.dot(x_ref[...], w_all_ref[...],
                  preferred_element_type=jnp.float32)
          + b_all_ref[...])                                     # (T*B, 4H)

    h = jnp.zeros((B, H), jnp.float32)
    c = jnp.zeros((B, H), jnp.float32)

    # T is static and small -> fully unroll the serial recurrence.
    for t in range(T):
        # Single fused recurrent matmul per step: (B,H) x (H,4H) -> (B,4H).
        pre = xw[t * B:(t + 1) * B, :] + jnp.dot(
            h, u_all, preferred_element_type=jnp.float32)       # (B, 4H)

        sig = jax.nn.sigmoid(pre[:, :3 * H])    # [i | f | o] in one EUP call
        g_t = jnp.tanh(pre[:, 3 * H:])          # g (candidate cell)
        i_t = sig[:, :H]
        f_t = sig[:, H:2 * H]
        o_t = sig[:, 2 * H:3 * H]

        c = f_t * c + i_t * g_t
        h = o_t * jnp.tanh(c)
        # TODO(synk): nn.Dropout(0.5) applied to h_t each step is omitted
        # (inference semantics -> identity); training-mode dropout would use
        # pltpu.prng_seed / pltpu.prng_random_bits here.

    y_ref[...] = (jnp.dot(h, wout_ref[...],
                          preferred_element_type=jnp.float32)
                  + bout_ref[...]).astype(y_ref.dtype)


def lstm_forward(x, params):
    """x: (B, T, D) float32. params: dict of per-gate LSTM parameters."""
    B, T, D = x.shape
    H = params["W_i"].shape[1]
    O = params["W_out"].shape[1]

    # Fuse gates, column order [i | f | o | g] (b_f = 1.0 lands in the
    # forget-gate slice [H:2H]).
    W_all = jnp.concatenate(
        [params["W_i"], params["W_f"], params["W_o"], params["W_c"]], axis=1)
    U_all = jnp.concatenate(
        [params["U_i"], params["U_f"], params["U_o"], params["U_c"]], axis=1)
    b_all = jnp.concatenate(
        [params["b_i"], params["b_f"], params["b_o"], params["b_c"]]
    ).reshape(1, 4 * H)

    # Time-major + flatten: (B, T, D) -> (T, B, D) -> (T*B, D).
    x_tm = jnp.transpose(x, (1, 0, 2)).reshape(T * B, D)

    kernel = functools.partial(_lstm_kernel, T=T, B=B, H=H)
    vmem = pl.BlockSpec(memory_space=pltpu.MemorySpace.VMEM)

    # TODO(synk): for non-toy H (e.g. H >= 2048) the fused U_all alone would
    # not fit v7x VMEM; that regime needs a T-tiled grid with h/c carried in
    # VMEM scratch and bf16 weights. Not needed at assignment shapes.
    return pl.pallas_call(
        kernel,
        out_shape=jax.ShapeDtypeStruct((B, O), jnp.float32),
        in_specs=[vmem] * 6,
        out_specs=vmem,
        compiler_params=pltpu.CompilerParams(
            vmem_limit_bytes=64 * 1024 * 1024),
    )(x_tm, W_all, U_all, b_all,
      params["W_out"], params["b_out"].reshape(1, O))


def _xavier_uniform(key, shape):
    fan_in, fan_out = shape
    bound = (6.0 / (fan_in + fan_out)) ** 0.5
    return jax.random.uniform(key, shape, jnp.float32, -bound, bound)


def init_lstm_params(key, input_dim, hidden_dim, output_dim):
    keys = jax.random.split(key, 9)
    params = {
        "W_i": _xavier_uniform(keys[0], (input_dim, hidden_dim)),
        "U_i": _xavier_uniform(keys[1], (hidden_dim, hidden_dim)),
        "b_i": jnp.zeros((hidden_dim,), jnp.float32),
        "W_f": _xavier_uniform(keys[2], (input_dim, hidden_dim)),
        "U_f": _xavier_uniform(keys[3], (hidden_dim, hidden_dim)),
        "b_f": jnp.ones((hidden_dim,), jnp.float32),   # b_f init to 1.0
        "W_c": _xavier_uniform(keys[4], (input_dim, hidden_dim)),
        "U_c": _xavier_uniform(keys[5], (hidden_dim, hidden_dim)),
        "b_c": jnp.zeros((hidden_dim,), jnp.float32),
        "W_o": _xavier_uniform(keys[6], (input_dim, hidden_dim)),
        "U_o": _xavier_uniform(keys[7], (hidden_dim, hidden_dim)),
        "b_o": jnp.zeros((hidden_dim,), jnp.float32),
        "W_out": _xavier_uniform(keys[8], (hidden_dim, output_dim)),
        "b_out": jnp.zeros((output_dim,), jnp.float32),
    }
    return params


def lstm_reference(x, p):
    """Pure-JAX reference matching the PyTorch forward (dropout = identity)."""
    B, T, D = x.shape
    H = p["W_i"].shape[1]
    h = jnp.zeros((B, H), jnp.float32)
    c = jnp.zeros((B, H), jnp.float32)
    for t in range(T):
        x_t = x[:, t, :]
        i_t = jax.nn.sigmoid(x_t @ p["W_i"] + h @ p["U_i"] + p["b_i"])
        f_t = jax.nn.sigmoid(x_t @ p["W_f"] + h @ p["U_f"] + p["b_f"])
        g_t = jnp.tanh(x_t @ p["W_c"] + h @ p["U_c"] + p["b_c"])
        o_t = jax.nn.sigmoid(x_t @ p["W_o"] + h @ p["U_o"] + p["b_o"])
        c = f_t * c + i_t * g_t
        h = o_t * jnp.tanh(c)
    return h @ p["W_out"] + p["b_out"]


if __name__ == "__main__":
    # Small shapes implied by the forward: x is (batch, seq_length, input_dim).
    batch, seq_length, input_dim, hidden_dim, output_dim = 2, 8, 4, 32, 8

    key = jax.random.PRNGKey(0)
    k_x, k_p = jax.random.split(key)
    x = jax.random.normal(k_x, (batch, seq_length, input_dim), jnp.float32)
    params = init_lstm_params(k_p, input_dim, hidden_dim, output_dim)

    y = jax.block_until_ready(lstm_forward(x, params))
    y_ref = lstm_reference(x, params)

    assert y.shape == (batch, output_dim)
    assert jnp.allclose(y, y_ref, atol=1e-4, rtol=1e-4), "mismatch vs reference"
    print("KERNEL_OK")
</pallas_src>

<mosaic_0001>
module attributes {stable_mosaic.version = 11 : i64} {
  func.func @_lstm_kernel(%arg0: memref<16x4xf32, #tpu.memory_space<vmem>>, %arg1: memref<4x128xf32, #tpu.memory_space<vmem>>, %arg2: memref<32x128xf32, #tpu.memory_space<vmem>>, %arg3: memref<1x128xf32, #tpu.memory_space<vmem>>, %arg4: memref<32x8xf32, #tpu.memory_space<vmem>>, %arg5: memref<1x8xf32, #tpu.memory_space<vmem>>, %arg6: memref<2x8xf32, #tpu.memory_space<vmem>>) attributes {dimension_semantics = [], scalar_prefetch = 0 : i64, scratch_operands = 0 : i64, tpu.core_type = #tpu.core_type<tc>} {
    %c0 = arith.constant 0 : index
    %c0_0 = arith.constant 0 : index
    %0 = vector.load %arg2[%c0, %c0_0] : memref<32x128xf32, #tpu.memory_space<vmem>>, vector<32x128xf32>
    %c0_1 = arith.constant 0 : index
    %c0_2 = arith.constant 0 : index
    %1 = vector.load %arg0[%c0_1, %c0_2] : memref<16x4xf32, #tpu.memory_space<vmem>>, vector<16x4xf32>
    %c0_3 = arith.constant 0 : index
    %c0_4 = arith.constant 0 : index
    %2 = vector.load %arg1[%c0_3, %c0_4] : memref<4x128xf32, #tpu.memory_space<vmem>>, vector<4x128xf32>
    %cst = arith.constant dense<0.000000e+00> : vector<16x128xf32>
    %3 = tpu.matmul %1, %2, %cst {dimension_numbers = #tpu.dot_dimension_numbers<[1], [0], [0], [1], [0, 0, 1, 1], [], []>} : vector<16x4xf32>, vector<4x128xf32>, vector<16x128xf32> -> vector<16x128xf32>
    %c0_5 = arith.constant 0 : index
    %c0_6 = arith.constant 0 : index
    %4 = vector.load %arg3[%c0_5, %c0_6] : memref<1x128xf32, #tpu.memory_space<vmem>>, vector<1x128xf32>
    %5 = vector.broadcast %4 : vector<1x128xf32> to vector<16x128xf32>
    %6 = arith.addf %3, %5 : vector<16x128xf32>
    %cst_7 = arith.constant 0.000000e+00 : f32
    %7 = vector.broadcast %cst_7 : f32 to vector<2x32xf32>
    %cst_8 = arith.constant 0.000000e+00 : f32
    %8 = vector.broadcast %cst_8 : f32 to vector<2x32xf32>
    %9 = vector.extract_strided_slice %6 {offsets = [0, 0], sizes = [2, 128], strides = [1, 1]} : vector<16x128xf32> to vector<2x128xf32>
    %cst_9 = arith.constant dense<0.000000e+00> : vector<2x128xf32>
    %10 = tpu.matmul %7, %0, %cst_9 {dimension_numbers = #tpu.dot_dimension_numbers<[1], [0], [0], [1], [0, 0, 1, 1], [], []>} : vector<2x32xf32>, vector<32x128xf32>, vector<2x128xf32> -> vector<2x128xf32>
    %11 = arith.addf %9, %10 : vector<2x128xf32>
    %12 = vector.extract_strided_slice %11 {offsets = [0, 0], sizes = [2, 96], strides = [1, 1]} : vector<2x128xf32> to vector<2x96xf32>
    %13 = arith.negf %12 : vector<2x96xf32>
    %14 = math.exp %13 : vector<2x96xf32>
    %cst_10 = arith.constant 1.000000e+00 : f32
    %15 = vector.broadcast %cst_10 : f32 to vector<2x96xf32>
    %16 = arith.addf %15, %14 : vector<2x96xf32>
    %17 = arith.divf %15, %16 : vector<2x96xf32>
    %18 = vector.extract_strided_slice %11 {offsets = [0, 96], sizes = [2, 32], strides = [1, 1]} : vector<2x128xf32> to vector<2x32xf32>
    %19 = math.tanh %18 : vector<2x32xf32>
    %20 = vector.extract_strided_slice %17 {offsets = [0, 0], sizes = [2, 32], strides = [1, 1]} : vector<2x96xf32> to vector<2x32xf32>
    %21 = vector.extract_strided_slice %17 {offsets = [0, 32], sizes = [2, 32], strides = [1, 1]} : vector<2x96xf32> to vector<2x32xf32>
    %22 = vector.extract_strided_slice %17 {offsets = [0, 64], sizes = [2, 32], strides = [1, 1]} : vector<2x96xf32> to vector<2x32xf32>
    %23 = arith.mulf %21, %8 : vector<2x32xf32>
    %24 = arith.mulf %20, %19 : vector<2x32xf32>
    %25 = arith.addf %23, %24 : vector<2x32xf32>
    %26 = math.tanh %25 : vector<2x32xf32>
    %27 = arith.mulf %22, %26 : vector<2x32xf32>
    %28 = vector.extract_strided_slice %6 {offsets = [2, 0], sizes = [2, 128], strides = [1, 1]} : vector<16x128xf32> to vector<2x128xf32>
    %cst_11 = arith.constant dense<0.000000e+00> : vector<2x128xf32>
    %29 = tpu.matmul %27, %0, %cst_11 {dimension_numbers = #tpu.dot_dimension_numbers<[1], [0], [0], [1], [0, 0, 1, 1], [], []>} : vector<2x32xf32>, vector<32x128xf32>, vector<2x128xf32> -> vector<2x128xf32>
    %30 = arith.addf %28, %29 : vector<2x128xf32>
    %31 = vector.extract_strided_slice %30 {offsets = [0, 0], sizes = [2, 96], strides = [1, 1]} : vector<2x128xf32> to vector<2x96xf32>
    %32 = arith.negf %31 : vector<2x96xf32>
    %33 = math.exp %32 : vector<2x96xf32>
    %cst_12 = arith.constant 1.000000e+00 : f32
    %34 = vector.broadcast %cst_12 : f32 to vector<2x96xf32>
    %35 = arith.addf %34, %33 : vector<2x96xf32>
    %36 = arith.divf %34, %35 : vector<2x96xf32>
    %37 = vector.extract_strided_slice %30 {offsets = [0, 96], sizes = [2, 32], strides = [1, 1]} : vector<2x128xf32> to vector<2x32xf32>
    %38 = math.tanh %37 : vector<2x32xf32>
    %39 = vector.extract_strided_slice %36 {offsets = [0, 0], sizes = [2, 32], strides = [1, 1]} : vector<2x96xf32> to vector<2x32xf32>
    %40 = vector.extract_strided_slice %36 {offsets = [0, 32], sizes = [2, 32], strides = [1, 1]} : vector<2x96xf32> to vector<2x32xf32>
    %41 = vector.extract_strided_slice %36 {offsets = [0, 64], sizes = [2, 32], strides = [1, 1]} : vector<2x96xf32> to vector<2x32xf32>
    %42 = arith.mulf %40, %25 : vector<2x32xf32>
    %43 = arith.mulf %39, %38 : vector<2x32xf32>
    %44 = arith.addf %42, %43 : vector<2x32xf32>
    %45 = math.tanh %44 : vector<2x32xf32>
    %46 = arith.mulf %41, %45 : vector<2x32xf32>
    %47 = vector.extract_strided_slice %6 {offsets = [4, 0], sizes = [2, 128], strides = [1, 1]} : vector<16x128xf32> to vector<2x128xf32>
    %cst_13 = arith.constant dense<0.000000e+00> : vector<2x128xf32>
    %48 = tpu.matmul %46, %0, %cst_13 {dimension_numbers = #tpu.dot_dimension_numbers<[1], [0], [0], [1], [0, 0, 1, 1], [], []>} : vector<2x32xf32>, vector<32x128xf32>, vector<2x128xf32> -> vector<2x128xf32>
    %49 = arith.addf %47, %48 : vector<2x128xf32>
    %50 = vector.extract_strided_slice %49 {offsets = [0, 0], sizes = [2, 96], strides = [1, 1]} : vector<2x128xf32> to vector<2x96xf32>
    %51 = arith.negf %50 : vector<2x96xf32>
    %52 = math.exp %51 : vector<2x96xf32>
    %cst_14 = arith.constant 1.000000e+00 : f32
    %53 = vector.broadcast %cst_14 : f32 to vector<2x96xf32>
    %54 = arith.addf %53, %52 : vector<2x96xf32>
    %55 = arith.divf %53, %54 : vector<2x96xf32>
    %56 = vector.extract_strided_slice %49 {offsets = [0, 96], sizes = [2, 32], strides = [1, 1]} : vector<2x128xf32> to vector<2x32xf32>
    %57 = math.tanh %56 : vector<2x32xf32>
    %58 = vector.extract_strided_slice %55 {offsets = [0, 0], sizes = [2, 32], strides = [1, 1]} : vector<2x96xf32> to vector<2x32xf32>
    %59 = vector.extract_strided_slice %55 {offsets = [0, 32], sizes = [2, 32], strides = [1, 1]} : vector<2x96xf32> to vector<2x32xf32>
    %60 = vector.extract_strided_slice %55 {offsets = [0, 64], sizes = [2, 32], strides = [1, 1]} : vector<2x96xf32> to vector<2x32xf32>
    %61 = arith.mulf %59, %44 : vector<2x32xf32>
    %62 = arith.mulf %58, %57 : vector<2x32xf32>
    %63 = arith.addf %61, %62 : vector<2x32xf32>
    %64 = math.tanh %63 : vector<2x32xf32>
    %65 = arith.mulf %60, %64 : vector<2x32xf32>
    %66 = vector.extract_strided_slice %6 {offsets = [6, 0], sizes = [2, 128], strides = [1, 1]} : vector<16x128xf32> to vector<2x128xf32>
    %cst_15 = arith.constant dense<0.000000e+00> : vector<2x128xf32>
    %67 = tpu.matmul %65, %0, %cst_15 {dimension_numbers = #tpu.dot_dimension_numbers<[1], [0], [0], [1], [0, 0, 1, 1], [], []>} : vector<2x32xf32>, vector<32x128xf32>, vector<2x128xf32> -> vector<2x128xf32>
    %68 = arith.addf %66, %67 : vector<2x128xf32>
    %69 = vector.extract_strided_slice %68 {offsets = [0, 0], sizes = [2, 96], strides = [1, 1]} : vector<2x128xf32> to vector<2x96xf32>
    %70 = arith.negf %69 : vector<2x96xf32>
    %71 = math.exp %70 : vector<2x96xf32>
    %cst_16 = arith.constant 1.000000e+00 : f32
    %72 = vector.broadcast %cst_16 : f32 to vector<2x96xf32>
    %73 = arith.addf %72, %71 : vector<2x96xf32>
    %74 = arith.divf %72, %73 : vector<2x96xf32>
    %75 = vector.extract_strided_slice %68 {offsets = [0, 96], sizes = [2, 32], strides = [1, 1]} : vector<2x128xf32> to vector<2x32xf32>
    %76 = math.tanh %75 : vector<2x32xf32>
    %77 = vector.extract_strided_slice %74 {offsets = [0, 0], sizes = [2, 32], strides = [1, 1]} : vector<2x96xf32> to vector<2x32xf32>
    %78 = vector.extract_strided_slice %74 {offsets = [0, 32], sizes = [2, 32], strides = [1, 1]} : vector<2x96xf32> to vector<2x32xf32>
    %79 = vector.extract_strided_slice %74 {offsets = [0, 64], sizes = [2, 32], strides = [1, 1]} : vector<2x96xf32> to vector<2x32xf32>
    %80 = arith.mulf %78, %63 : vector<2x32xf32>
    %81 = arith.mulf %77, %76 : vector<2x32xf32>
    %82 = arith.addf %80, %81 : vector<2x32xf32>
    %83 = math.tanh %82 : vector<2x32xf32>
    %84 = arith.mulf %79, %83 : vector<2x32xf32>
    %85 = vector.extract_strided_slice %6 {offsets = [8, 0], sizes = [2, 128], strides = [1, 1]} : vector<16x128xf32> to vector<2x128xf32>
    %cst_17 = arith.constant dense<0.000000e+00> : vector<2x128xf32>
    %86 = tpu.matmul %84, %0, %cst_17 {dimension_numbers = #tpu.dot_dimension_numbers<[1], [0], [0], [1], [0, 0, 1, 1], [], []>} : vector<2x32xf32>, vector<32x128xf32>, vector<2x128xf32> -> vector<2x128xf32>
    %87 = arith.addf %85, %86 : vector<2x128xf32>
    %88 = vector.extract_strided_slice %87 {offsets = [0, 0], sizes = [2, 96], strides = [1, 1]} : vector<2x128xf32> to vector<2x96xf32>
    %89 = arith.negf %88 : vector<2x96xf32>
    %90 = math.exp %89 : vector<2x96xf32>
    %cst_18 = arith.constant 1.000000e+00 : f32
    %91 = vector.broadcast %cst_18 : f32 to vector<2x96xf32>
    %92 = arith.addf %91, %90 : vector<2x96xf32>
    %93 = arith.divf %91, %92 : vector<2x96xf32>
    %94 = vector.extract_strided_slice %87 {offsets = [0, 96], sizes = [2, 32], strides = [1, 1]} : vector<2x128xf32> to vector<2x32xf32>
    %95 = math.tanh %94 : vector<2x32xf32>
    %96 = vector.extract_strided_slice %93 {offsets = [0, 0], sizes = [2, 32], strides = [1, 1]} : vector<2x96xf32> to vector<2x32xf32>
    %97 = vector.extract_strided_slice %93 {offsets = [0, 32], sizes = [2, 32], strides = [1, 1]} : vector<2x96xf32> to vector<2x32xf32>
    %98 = vector.extract_strided_slice %93 {offsets = [0, 64], sizes = [2, 32], strides = [1, 1]} : vector<2x96xf32> to vector<2x32xf32>
    %99 = arith.mulf %97, %82 : vector<2x32xf32>
    %100 = arith.mulf %96, %95 : vector<2x32xf32>
    %101 = arith.addf %99, %100 : vector<2x32xf32>
    %102 = math.tanh %101 : vector<2x32xf32>
    %103 = arith.mulf %98, %102 : vector<2x32xf32>
    %104 = vector.extract_strided_slice %6 {offsets = [10, 0], sizes = [2, 128], strides = [1, 1]} : vector<16x128xf32> to vector<2x128xf32>
    %cst_19 = arith.constant dense<0.000000e+00> : vector<2x128xf32>
    %105 = tpu.matmul %103, %0, %cst_19 {dimension_numbers = #tpu.dot_dimension_numbers<[1], [0], [0], [1], [0, 0, 1, 1], [], []>} : vector<2x32xf32>, vector<32x128xf32>, vector<2x128xf32> -> vector<2x128xf32>
    %106 = arith.addf %104, %105 : vector<2x128xf32>
    %107 = vector.extract_strided_slice %106 {offsets = [0, 0], sizes = [2, 96], strides = [1, 1]} : vector<2x128xf32> to vector<2x96xf32>
    %108 = arith.negf %107 : vector<2x96xf32>
    %109 = math.exp %108 : vector<2x96xf32>
    %cst_20 = arith.constant 1.000000e+00 : f32
    %110 = vector.broadcast %cst_20 : f32 to vector<2x96xf32>
    %111 = arith.addf %110, %109 : vector<2x96xf32>
    %112 = arith.divf %110, %111 : vector<2x96xf32>
    %113 = vector.extract_strided_slice %106 {offsets = [0, 96], sizes = [2, 32], strides = [1, 1]} : vector<2x128xf32> to vector<2x32xf32>
    %114 = math.tanh %113 : vector<2x32xf32>
    %115 = vector.extract_strided_slice %112 {offsets = [0, 0], sizes = [2, 32], strides = [1, 1]} : vector<2x96xf32> to vector<2x32xf32>
    %116 = vector.extract_strided_slice %112 {offsets = [0, 32], sizes = [2, 32], strides = [1, 1]} : vector<2x96xf32> to vector<2x32xf32>
    %117 = vector.extract_strided_slice %112 {offsets = [0, 64], sizes = [2, 32], strides = [1, 1]} : vector<2x96xf32> to vector<2x32xf32>
    %118 = arith.mulf %116, %101 : vector<2x32xf32>
    %119 = arith.mulf %115, %114 : vector<2x32xf32>
    %120 = arith.addf %118, %119 : vector<2x32xf32>
    %121 = math.tanh %120 : vector<2x32xf32>
    %122 = arith.mulf %117, %121 : vector<2x32xf32>
    %123 = vector.extract_strided_slice %6 {offsets = [12, 0], sizes = [2, 128], strides = [1, 1]} : vector<16x128xf32> to vector<2x128xf32>
    %cst_21 = arith.constant dense<0.000000e+00> : vector<2x128xf32>
    %124 = tpu.matmul %122, %0, %cst_21 {dimension_numbers = #tpu.dot_dimension_numbers<[1], [0], [0], [1], [0, 0, 1, 1], [], []>} : vector<2x32xf32>, vector<32x128xf32>, vector<2x128xf32> -> vector<2x128xf32>
    %125 = arith.addf %123, %124 : vector<2x128xf32>
    %126 = vector.extract_strided_slice %125 {offsets = [0, 0], sizes = [2, 96], strides = [1, 1]} : vector<2x128xf32> to vector<2x96xf32>
    %127 = arith.negf %126 : vector<2x96xf32>
    %128 = math.exp %127 : vector<2x96xf32>
    %cst_22 = arith.constant 1.000000e+00 : f32
    %129 = vector.broadcast %cst_22 : f32 to vector<2x96xf32>
    %130 = arith.addf %129, %128 : vector<2x96xf32>
    %131 = arith.divf %129, %130 : vector<2x96xf32>
    %132 = vector.extract_strided_slice %125 {offsets = [0, 96], sizes = [2, 32], strides = [1, 1]} : vector<2x128xf32> to vector<2x32xf32>
    %133 = math.tanh %132 : vector<2x32xf32>
    %134 = vector.extract_strided_slice %131 {offsets = [0, 0], sizes = [2, 32], strides = [1, 1]} : vector<2x96xf32> to vector<2x32xf32>
    %135 = vector.extract_strided_slice %131 {offsets = [0, 32], sizes = [2, 32], strides = [1, 1]} : vector<2x96xf32> to vector<2x32xf32>
    %136 = vector.extract_strided_slice %131 {offsets = [0, 64], sizes = [2, 32], strides = [1, 1]} : vector<2x96xf32> to vector<2x32xf32>
    %137 = arith.mulf %135, %120 : vector<2x32xf32>
    %138 = arith.mulf %134, %133 : vector<2x32xf32>
    %139 = arith.addf %137, %138 : vector<2x32xf32>
    %140 = math.tanh %139 : vector<2x32xf32>
    %141 = arith.mulf %136, %140 : vector<2x32xf32>
    %142 = vector.extract_strided_slice %6 {offsets = [14, 0], sizes = [2, 128], strides = [1, 1]} : vector<16x128xf32> to vector<2x128xf32>
    %cst_23 = arith.constant dense<0.000000e+00> : vector<2x128xf32>
    %143 = tpu.matmul %141, %0, %cst_23 {dimension_numbers = #tpu.dot_dimension_numbers<[1], [0], [0], [1], [0, 0, 1, 1], [], []>} : vector<2x32xf32>, vector<32x128xf32>, vector<2x128xf32> -> vector<2x128xf32>
    %144 = arith.addf %142, %143 : vector<2x128xf32>
    %145 = vector.extract_strided_slice %144 {offsets = [0, 0], sizes = [2, 96], strides = [1, 1]} : vector<2x128xf32> to vector<2x96xf32>
    %146 = arith.negf %145 : vector<2x96xf32>
    %147 = math.exp %146 : vector<2x96xf32>
    %cst_24 = arith.constant 1.000000e+00 : f32
    %148 = vector.broadcast %cst_24 : f32 to vector<2x96xf32>
    %149 = arith.addf %148, %147 : vector<2x96xf32>
    %150 = arith.divf %148, %149 : vector<2x96xf32>
    %151 = vector.extract_strided_slice %144 {offsets = [0, 96], sizes = [2, 32], strides = [1, 1]} : vector<2x128xf32> to vector<2x32xf32>
    %152 = math.tanh %151 : vector<2x32xf32>
    %153 = vector.extract_strided_slice %150 {offsets = [0, 0], sizes = [2, 32], strides = [1, 1]} : vector<2x96xf32> to vector<2x32xf32>
    %154 = vector.extract_strided_slice %150 {offsets = [0, 32], sizes = [2, 32], strides = [1, 1]} : vector<2x96xf32> to vector<2x32xf32>
    %155 = vector.extract_strided_slice %150 {offsets = [0, 64], sizes = [2, 32], strides = [1, 1]} : vector<2x96xf32> to vector<2x32xf32>
    %156 = arith.mulf %154, %139 : vector<2x32xf32>
    %157 = arith.mulf %153, %152 : vector<2x32xf32>
    %158 = arith.addf %156, %157 : vector<2x32xf32>
    %159 = math.tanh %158 : vector<2x32xf32>
    %160 = arith.mulf %155, %159 : vector<2x32xf32>
    %c0_25 = arith.constant 0 : index
    %c0_26 = arith.constant 0 : index
    %161 = vector.load %arg4[%c0_25, %c0_26] : memref<32x8xf32, #tpu.memory_space<vmem>>, vector<32x8xf32>
    %cst_27 = arith.constant dense<0.000000e+00> : vector<2x8xf32>
    %162 = tpu.matmul %160, %161, %cst_27 {dimension_numbers = #tpu.dot_dimension_numbers<[1], [0], [0], [1], [0, 0, 1, 1], [], []>} : vector<2x32xf32>, vector<32x8xf32>, vector<2x8xf32> -> vector<2x8xf32>
    %c0_28 = arith.constant 0 : index
    %c0_29 = arith.constant 0 : index
    %163 = vector.load %arg5[%c0_28, %c0_29] : memref<1x8xf32, #tpu.memory_space<vmem>>, vector<1x8xf32>
    %164 = vector.broadcast %163 : vector<1x8xf32> to vector<2x8xf32>
    %165 = arith.addf %162, %164 : vector<2x8xf32>
    %c0_30 = arith.constant 0 : index
    %c0_31 = arith.constant 0 : index
    %166 = vector.load %arg6[%c0_30, %c0_31] : memref<2x8xf32, #tpu.memory_space<vmem>>, vector<2x8xf32>
    tpu.vector_store %arg6[%c0_30, %c0_31], %165 {strides = array<i32>} : memref<2x8xf32, #tpu.memory_space<vmem>>, vector<2x8xf32>,
    return
  }
}

</mosaic_0001>

<llo_original>
// kernel: tpu_custom_call.1
$region0: #{tpu_custom_call.1}
  #allocation0 [shape = 'u32[]', space=smem, size = 0x4, offset = 0x4, fixed_abs, tag = 'smem constant byte address 0x4 - core index']
  #allocation1 [shape = 'u32[72,128]{1,0:T(1,128)}', space=vmem, size = 0x9000, scoped, tag = 'internal scratch']
  %s0 = inlined_call_operand.vmem [shape: f32[16,4], index: 0, kind: input, shape index: {}]
  %s1 = inlined_call_operand.vmem [shape: f32[4,128], index: 1, kind: input, shape index: {}]
  %s2 = inlined_call_operand.vmem [shape: f32[32,128], index: 2, kind: input, shape index: {}]
  %s3 = inlined_call_operand.vmem [shape: f32[1,128], index: 3, kind: input, shape index: {}]
  %s4 = inlined_call_operand.vmem [shape: f32[32,8], index: 4, kind: input, shape index: {}]
  %s5 = inlined_call_operand.vmem [shape: f32[1,8], index: 5, kind: input, shape index: {}]
  %s6 = inlined_call_operand.hbm [shape: f32[2,8], index: 6, kind: output, shape index: {}]
  %s7 = sld [smem:[#allocation0]]
  $region34: #{tpu_custom_call.1} parent=0
    _
  %s9 = ssub.s32 1, %s7
  %s10 = scalar_select 0, %s9, %s7
  $region1: #{tpu_custom_call.1} parent=0
    #allocation2 [shape = 'u8[1024]{0}', space=vmem, size = 0x400, scoped, tag = 'output window, operand 0, single buffered']
    #allocation3 [shape = 's32[1]{0}', space=sflag, size = 0x4, scoped, tag = 'scoped memory for tpu_custom_call.1']
    %11 = vsyncpa [#allocation3], 0
    // Predicated region
    $region2: #{tpu_custom_call.1} parent=1 // pred_check
      _
    $region3: #{tpu_custom_call.1} parent=1 // pred_check_branch
      %13 = sbr.rel (0) target = $region5
    $region4: #{tpu_custom_call.1} parent=1 // pred_region
      _
    $region5: #{tpu_custom_call.1} parent=1 // pred_fallthru
      _
    // Predicated region
    $region6: #{tpu_custom_call.1} parent=1 // pred_check
      _
    $region7: #{tpu_custom_call.1} parent=1 // pred_check_branch
      %15 = sbr.rel (0) target = $region9
    $region8: #{tpu_custom_call.1} parent=1 // pred_region
      _
    $region9: #{tpu_custom_call.1} parent=1 // pred_fallthru
      _
    // Predicated region
    $region10: #{tpu_custom_call.1} parent=1 // pred_check
      _
    $region11: #{tpu_custom_call.1} parent=1 // pred_check_branch
      %17 = sbr.rel (0) target = $region13
    $region12: #{tpu_custom_call.1} parent=1 // pred_region
      _
    $region13: #{tpu_custom_call.1} parent=1 // pred_fallthru
      _
    // Predicated region
    $region14: #{tpu_custom_call.1} parent=1 // pred_check
      _
    $region15: #{tpu_custom_call.1} parent=1 // pred_check_branch
      %19 = sbr.rel (0) target = $region17
    $region16: #{tpu_custom_call.1} parent=1 // pred_region
      _
    $region17: #{tpu_custom_call.1} parent=1 // pred_fallthru
      _
    // Predicated region
    $region18: #{tpu_custom_call.1} parent=1 // pred_check
      _
    $region19: #{tpu_custom_call.1} parent=1 // pred_check_branch
      %21 = sbr.rel (0) target = $region21
    $region20: #{tpu_custom_call.1} parent=1 // pred_region
      _
    $region21: #{tpu_custom_call.1} parent=1 // pred_fallthru
      _
    // Predicated region
    $region22: #{tpu_custom_call.1} parent=1 // pred_check
      _
    $region23: #{tpu_custom_call.1} parent=1 // pred_check_branch
      %23 = sbr.rel (0) target = $region25
    $region24: #{tpu_custom_call.1} parent=1 // pred_region
      _
    $region25: #{tpu_custom_call.1} parent=1 // pred_fallthru
      _
    %v24 = vld [vmem:[%s2] sm:$0xff]
    %v25 = vld [vmem:[%s2 + $0x8] sm:$0xff]
    %v26 = vld [vmem:[%s2 + $0x10] sm:$0xff]
    %v27 = vld [vmem:[%s2 + $0x18] sm:$0xff]
    %v28 = vld [vmem:[%s0] sm:$0xff]
    %v29 = vld [vmem:[%s0 + $0x8] sm:$0xff]
    %v30 = vld [vmem:[%s1] sm:$0xf]
    %v31 = vld [vmem:[%s3] sm:$0x1]
    %v33 = vperm.slane %v31, 0
    %vm35 = vcmask 31744
    %v37 = vsel %vm35, %v28, 0
    %v40 = vsel %vm35, %v29, 0
    %vm42 = vcmask 1043456
    %v44 = vsel %vm42, %v30, 0
    %46 = vmatpush.msra.mxu0 0.0
    %47 = vmatpush.msra.mxu0 0.0
    %48 = vmatpush.msra.mxu0 0.0
    %49 = vmatpush.msra.mxu0 0.0
    %50 = vmatpush.msra.mxu0 0.0
    %51 = vmatpush.msra.mxu0 0.0
    %52 = vmatpush.msra.mxu0 0.0
    %53 = vmatpush.msra.mxu0 0.0
    %54 = vmatpush.msra.mxu0 0.0
    %55 = vmatpush.msra.mxu0 0.0
    %56 = vmatpush.msra.mxu0 0.0
    %57 = vmatpush.msra.mxu0 0.0
    %58 = vmatpush.msra.mxu0 0.0
    %59 = vmatpush.msra.mxu0 0.0
    %60 = vmatpush.msra.mxu0 0.0
    %61 = vmatpush.msra.mxu0 %v44
    %62 = vmatmul.f32.gmra.mxu0 %v37
    %v63 = vpop.f32.mrf.mxu0
    %v64 = vadd.f32 %v33, %v63
    %65 = vmatmul.f32.gmra.mxu0 %v40
    %v66 = vpop.f32.mrf.mxu0
    %v67 = vadd.f32 %v33, %v66
    %68 = vdwg.mxu0
    %vm69 = vcmask 261120
    %v71 = vsel %vm69, 0.0, 0
    %73 = vmatpush.msra.mxu0 0.0
    %74 = vmatpush.msra.mxu0 0.0
    %75 = vmatpush.msra.mxu0 0.0
    %76 = vmatpush.msra.mxu0 0.0
    %77 = vmatpush.msra.mxu0 0.0
    %78 = vmatpush.msra.mxu0 0.0
    %79 = vmatpush.msra.mxu0 0.0
    %80 = vmatpush.msra.mxu0 0.0
    %81 = vmatpush.msra.mxu0 0.0
    %82 = vmatpush.msra.mxu0 0.0
    %83 = vmatpush.msra.mxu0 0.0
    %84 = vmatpush.msra.mxu0 0.0
    %85 = vmatpush.msra.mxu0 %v27
    %86 = vmatpush.msra.mxu0 %v26
    %87 = vmatpush.msra.mxu0 %v25
    %88 = vmatpush.msra.mxu0 %v24
    %89 = vmatmul.f32.gmra.mxu0 %v71
    %v90 = vpop.f32.mrf.mxu0
    %v91 = vadd.f32 0.0, %v90
    %92 = vdwg.mxu0
    %v93 = vadd.f32 %v64, %v91
    %v94 = vxor.u32 %v93, 2147483648
    %v95 = vmul.f32 %v94, 1.442695
    %v96 = vpow.pop %v95
    %v97 = vadd.f32 %v96, 1.0
    %v98 = vrcp.pop %v97
    %v99 = vmul.f32 %v97, %v98
    %v100 = vsub.f32 1.0, %v99
    %v101 = vmul.f32 %v98, %v100
    %v102 = vadd.f32 %v98, %v101
    %vm103 = vweird.f32 %v97
    %vm104 = vweird.f32 %v98
    %vm105 = vmor %vm103, %vm104
    %v106 = vsel %vm105, %v98, %v102
    %v107 = vand.u32 2147483647, %v97
    %vm108 = vcmp.eq.f32.partialorder %v107, 8.507059e+37
    %v109 = vand.u32 %v97, 2147483648
    %v110 = vor.u32 1.1754944e-38, %v109
    %v111 = vsel %vm108, %v110, %v106
    %v112 = vmul.f32 1.0, %v111
    %v113 = vtanh.pop %v93
    %v114 = vmul.f32 %v112, 0.0
    %116 = vrot.lane.b32.xlu0 %v113, 32
    %v117 = vpop.permute.xlu0 %116
    %v119 = vmul.f32 %v112, %v117
    %121 = vrot.lane.b32.xlu0 %v119, 32
    %v122 = vpop.permute.xlu0 %121
    %v124 = vadd.f32 %v114, %v122
    %v125 = vtanh.pop %v124
    %127 = vrot.lane.b32.xlu0 %v125, 32
    %v128 = vpop.permute.xlu0 %127
    %v130 = vmul.f32 %v112, %v128
    %132 = vrot.lane.b32.xlu0 %v130, 64
    %v133 = vpop.permute.xlu0 %132
    %v134 = vsel %vm69, %v133, 0
    %136 = vmatpush.msra.mxu0 0.0
    %137 = vmatpush.msra.mxu0 0.0
    %138 = vmatpush.msra.mxu0 0.0
    %139 = vmatpush.msra.mxu0 0.0
    %140 = vmatpush.msra.mxu0 0.0
    %141 = vmatpush.msra.mxu0 0.0
    %142 = vmatpush.msra.mxu0 0.0
    %143 = vmatpush.msra.mxu0 0.0
    %144 = vmatpush.msra.mxu0 0.0
    %145 = vmatpush.msra.mxu0 0.0
    %146 = vmatpush.msra.mxu0 0.0
    %147 = vmatpush.msra.mxu0 0.0
    %148 = vmatpush.msra.mxu0 %v27
    %149 = vmatpush.msra.mxu0 %v26
    %150 = vmatpush.msra.mxu0 %v25
    %151 = vmatpush.msra.mxu0 %v24
    %152 = vmatmul.f32.gmra.mxu0 %v134
    %v153 = vpop.f32.mrf.mxu0
    %v154 = vadd.f32 0.0, %v153
    %155 = vdwg.mxu0
    %v157 = vrot.slane %v154, 6
    %v159 = vadd.f32 %v64, %v157
    %v160 = vxor.u32 %v159, 2147483648
    %v161 = vmul.f32 %v160, 1.442695
    %v162 = vpow.pop %v161
    %v163 = vadd.f32 %v162, 1.0
    %v164 = vrcp.pop %v163
    %v165 = vmul.f32 %v163, %v164
    %v166 = vsub.f32 1.0, %v165
    %v167 = vmul.f32 %v164, %v166
    %v168 = vadd.f32 %v164, %v167
    %vm169 = vweird.f32 %v163
    %vm170 = vweird.f32 %v164
    %vm171 = vmor %vm169, %vm170
    %v172 = vsel %vm171, %v164, %v168
    %v173 = vand.u32 2147483647, %v163
    %vm174 = vcmp.eq.f32.partialorder %v173, 8.507059e+37
    %v175 = vand.u32 %v163, 2147483648
    %v176 = vor.u32 1.1754944e-38, %v175
    %v177 = vsel %vm174, %v176, %v172
    %v178 = vmul.f32 1.0, %v177
    %v179 = vtanh.pop %v159
    %v181 = vrot.slane %v124, 6
    %v183 = vmul.f32 %v178, %v181
    %185 = vrot.lane.b32.xlu0 %v179, 32
    %v186 = vpop.permute.xlu0 %185
    %v188 = vmul.f32 %v178, %v186
    %190 = vrot.lane.b32.xlu0 %v188, 32
    %v191 = vpop.permute.xlu0 %190
    %v193 = vadd.f32 %v183, %v191
    %v194 = vtanh.pop %v193
    %196 = vrot.lane.b32.xlu0 %v194, 32
    %v197 = vpop.permute.xlu0 %196
    %v199 = vmul.f32 %v178, %v197
    %v201 = vrot.slane %v199, 2
    %202 = vrot.lane.b32.xlu0 %v201, 64
    %v203 = vpop.permute.xlu0 %202
    %v204 = vsel %vm69, %v203, 0
    %206 = vmatpush.msra.mxu0 0.0
    %207 = vmatpush.msra.mxu0 0.0
    %208 = vmatpush.msra.mxu0 0.0
    %209 = vmatpush.msra.mxu0 0.0
    %210 = vmatpush.msra.mxu0 0.0
    %211 = vmatpush.msra.mxu0 0.0
    %212 = vmatpush.msra.mxu0 0.0
    %213 = vmatpush.msra.mxu0 0.0
    %214 = vmatpush.msra.mxu0 0.0
    %215 = vmatpush.msra.mxu0 0.0
    %216 = vmatpush.msra.mxu0 0.0
    %217 = vmatpush.msra.mxu0 0.0
    %218 = vmatpush.msra.mxu0 %v27
    %219 = vmatpush.msra.mxu0 %v26
    %220 = vmatpush.msra.mxu0 %v25
    %221 = vmatpush.msra.mxu0 %v24
    %222 = vmatmul.f32.gmra.mxu0 %v204
    %v223 = vpop.f32.mrf.mxu0
    %v224 = vadd.f32 0.0, %v223
    %225 = vdwg.mxu0
    %v227 = vrot.slane %v224, 4
    %v229 = vadd.f32 %v64, %v227
    %v230 = vxor.u32 %v229, 2147483648
    %v231 = vmul.f32 %v230, 1.442695
    %v232 = vpow.pop %v231
    %v233 = vadd.f32 %v232, 1.0
    %v234 = vrcp.pop %v233
    %v235 = vmul.f32 %v233, %v234
    %v236 = vsub.f32 1.0, %v235
    %v237 = vmul.f32 %v234, %v236
    %v238 = vadd.f32 %v234, %v237
    %vm239 = vweird.f32 %v233
    %vm240 = vweird.f32 %v234
    %vm241 = vmor %vm239, %vm240
    %v242 = vsel %vm241, %v234, %v238
    %v243 = vand.u32 2147483647, %v233
    %vm244 = vcmp.eq.f32.partialorder %v243, 8.507059e+37
    %v245 = vand.u32 %v233, 2147483648
    %v246 = vor.u32 1.1754944e-38, %v245
    %v247 = vsel %vm244, %v246, %v242
    %v248 = vmul.f32 1.0, %v247
    %v249 = vtanh.pop %v229
    %v251 = vrot.slane %v193, 6
    %v253 = vmul.f32 %v248, %v251
    %255 = vrot.lane.b32.xlu0 %v249, 32
    %v256 = vpop.permute.xlu0 %255
    %v258 = vmul.f32 %v248, %v256
    %260 = vrot.lane.b32.xlu0 %v258, 32
    %v261 = vpop.permute.xlu0 %260
    %v263 = vadd.f32 %v253, %v261
    %v264 = vtanh.pop %v263
    %266 = vrot.lane.b32.xlu0 %v264, 32
    %v267 = vpop.permute.xlu0 %266
    %v269 = vmul.f32 %v248, %v267
    %v271 = vrot.slane %v269, 4
    %272 = vrot.lane.b32.xlu0 %v271, 64
    %v273 = vpop.permute.xlu0 %272
    %v274 = vsel %vm69, %v273, 0
    %276 = vmatpush.msra.mxu0 0.0
    %277 = vmatpush.msra.mxu0 0.0
    %278 = vmatpush.msra.mxu0 0.0
    %279 = vmatpush.msra.mxu0 0.0
    %280 = vmatpush.msra.mxu0 0.0
    %281 = vmatpush.msra.mxu0 0.0
    %282 = vmatpush.msra.mxu0 0.0
    %283 = vmatpush.msra.mxu0 0.0
    %284 = vmatpush.msra.mxu0 0.0
    %285 = vmatpush.msra.mxu0 0.0
    %286 = vmatpush.msra.mxu0 0.0
    %287 = vmatpush.msra.mxu0 0.0
    %288 = vmatpush.msra.mxu0 %v27
    %289 = vmatpush.msra.mxu0 %v26
    %290 = vmatpush.msra.mxu0 %v25
    %291 = vmatpush.msra.mxu0 %v24
    %292 = vmatmul.f32.gmra.mxu0 %v274
    %v293 = vpop.f32.mrf.mxu0
    %v294 = vadd.f32 0.0, %v293
    %295 = vdwg.mxu0
    %v297 = vrot.slane %v294, 2
    %v299 = vadd.f32 %v64, %v297
    %v300 = vxor.u32 %v299, 2147483648
    %v301 = vmul.f32 %v300, 1.442695
    %v302 = vpow.pop %v301
    %v303 = vadd.f32 %v302, 1.0
    %v304 = vrcp.pop %v303
    %v305 = vmul.f32 %v303, %v304
    %v306 = vsub.f32 1.0, %v305
    %v307 = vmul.f32 %v304, %v306
    %v308 = vadd.f32 %v304, %v307
    %vm309 = vweird.f32 %v303
    %vm310 = vweird.f32 %v304
    %vm311 = vmor %vm309, %vm310
    %v312 = vsel %vm311, %v304, %v308
    %v313 = vand.u32 2147483647, %v303
    %vm314 = vcmp.eq.f32.partialorder %v313, 8.507059e+37
    %v315 = vand.u32 %v303, 2147483648
    %v316 = vor.u32 1.1754944e-38, %v315
    %v317 = vsel %vm314, %v316, %v312
    %v318 = vmul.f32 1.0, %v317
    %v319 = vtanh.pop %v299
    %v321 = vrot.slane %v263, 6
    %v323 = vmul.f32 %v318, %v321
    %325 = vrot.lane.b32.xlu0 %v319, 32
    %v326 = vpop.permute.xlu0 %325
    %v328 = vmul.f32 %v318, %v326
    %330 = vrot.lane.b32.xlu0 %v328, 32
    %v331 = vpop.permute.xlu0 %330
    %v333 = vadd.f32 %v323, %v331
    %v334 = vtanh.pop %v333
    %336 = vrot.lane.b32.xlu0 %v334, 32
    %v337 = vpop.permute.xlu0 %336
    %v339 = vmul.f32 %v318, %v337
    %v341 = vrot.slane %v339, 6
    %342 = vrot.lane.b32.xlu0 %v341, 64
    %v343 = vpop.permute.xlu0 %342
    %v344 = vsel %vm69, %v343, 0
    %346 = vmatpush.msra.mxu0 0.0
    %347 = vmatpush.msra.mxu0 0.0
    %348 = vmatpush.msra.mxu0 0.0
    %349 = vmatpush.msra.mxu0 0.0
    %350 = vmatpush.msra.mxu0 0.0
    %351 = vmatpush.msra.mxu0 0.0
    %352 = vmatpush.msra.mxu0 0.0
    %353 = vmatpush.msra.mxu0 0.0
    %354 = vmatpush.msra.mxu0 0.0
    %355 = vmatpush.msra.mxu0 0.0
    %356 = vmatpush.msra.mxu0 0.0
    %357 = vmatpush.msra.mxu0 0.0
    %358 = vmatpush.msra.mxu0 %v27
    %359 = vmatpush.msra.mxu0 %v26
    %360 = vmatpush.msra.mxu0 %v25
    %361 = vmatpush.msra.mxu0 %v24
    %362 = vmatmul.f32.gmra.mxu0 %v344
    %v363 = vpop.f32.mrf.mxu0
    %v364 = vadd.f32 0.0, %v363
    %365 = vdwg.mxu0
    %v366 = vadd.f32 %v67, %v364
    %v367 = vxor.u32 %v366, 2147483648
    %v368 = vmul.f32 %v367, 1.442695
    %v369 = vpow.pop %v368
    %v370 = vadd.f32 %v369, 1.0
    %v371 = vrcp.pop %v370
    %v372 = vmul.f32 %v370, %v371
    %v373 = vsub.f32 1.0, %v372
    %v374 = vmul.f32 %v371, %v373
    %v375 = vadd.f32 %v371, %v374
    %vm376 = vweird.f32 %v370
    %vm377 = vweird.f32 %v371
    %vm378 = vmor %vm376, %vm377
    %v379 = vsel %vm378, %v371, %v375
    %v380 = vand.u32 2147483647, %v370
    %vm381 = vcmp.eq.f32.partialorder %v380, 8.507059e+37
    %v382 = vand.u32 %v370, 2147483648
    %v383 = vor.u32 1.1754944e-38, %v382
    %v384 = vsel %vm381, %v383, %v379
    %v385 = vmul.f32 1.0, %v384
    %v386 = vtanh.pop %v366
    %v388 = vrot.slane %v333, 6
    %v390 = vmul.f32 %v385, %v388
    %392 = vrot.lane.b32.xlu0 %v386, 32
    %v393 = vpop.permute.xlu0 %392
    %v395 = vmul.f32 %v385, %v393
    %397 = vrot.lane.b32.xlu0 %v395, 32
    %v398 = vpop.permute.xlu0 %397
    %v400 = vadd.f32 %v390, %v398
    %v401 = vtanh.pop %v400
    %403 = vrot.lane.b32.xlu0 %v401, 32
    %v404 = vpop.permute.xlu0 %403
    %v406 = vmul.f32 %v385, %v404
    %408 = vrot.lane.b32.xlu0 %v406, 64
    %v409 = vpop.permute.xlu0 %408
    %v410 = vsel %vm69, %v409, 0
    %412 = vmatpush.msra.mxu0 0.0
    %413 = vmatpush.msra.mxu0 0.0
    %414 = vmatpush.msra.mxu0 0.0
    %415 = vmatpush.msra.mxu0 0.0
    %416 = vmatpush.msra.mxu0 0.0
    %417 = vmatpush.msra.mxu0 0.0
    %418 = vmatpush.msra.mxu0 0.0
    %419 = vmatpush.msra.mxu0 0.0
    %420 = vmatpush.msra.mxu0 0.0
    %421 = vmatpush.msra.mxu0 0.0
    %422 = vmatpush.msra.mxu0 0.0
    %423 = vmatpush.msra.mxu0 0.0
    %424 = vmatpush.msra.mxu0 %v27
    %425 = vmatpush.msra.mxu0 %v26
    %426 = vmatpush.msra.mxu0 %v25
    %427 = vmatpush.msra.mxu0 %v24
    %428 = vmatmul.f32.gmra.mxu0 %v410
    %v429 = vpop.f32.mrf.mxu0
    %v430 = vadd.f32 0.0, %v429
    %431 = vdwg.mxu0
    %v433 = vrot.slane %v430, 6
    %v435 = vadd.f32 %v67, %v433
    %v436 = vxor.u32 %v435, 2147483648
    %v437 = vmul.f32 %v436, 1.442695
    %v438 = vpow.pop %v437
    %v439 = vadd.f32 %v438, 1.0
    %v440 = vrcp.pop %v439
    %v441 = vmul.f32 %v439, %v440
    %v442 = vsub.f32 1.0, %v441
    %v443 = vmul.f32 %v440, %v442
    %v444 = vadd.f32 %v440, %v443
    %vm445 = vweird.f32 %v439
    %vm446 = vweird.f32 %v440
    %vm447 = vmor %vm445, %vm446
    %v448 = vsel %vm447, %v440, %v444
    %v449 = vand.u32 2147483647, %v439
    %vm450 = vcmp.eq.f32.partialorder %v449, 8.507059e+37
    %v451 = vand.u32 %v439, 2147483648
    %v452 = vor.u32 1.1754944e-38, %v451
    %v453 = vsel %vm450, %v452, %v448
    %v454 = vmul.f32 1.0, %v453
    %v455 = vtanh.pop %v435
    %v457 = vrot.slane %v400, 6
    %v459 = vmul.f32 %v454, %v457
    %461 = vrot.lane.b32.xlu0 %v455, 32
    %v462 = vpop.permute.xlu0 %461
    %v464 = vmul.f32 %v454, %v462
    %466 = vrot.lane.b32.xlu0 %v464, 32
    %v467 = vpop.permute.xlu0 %466
    %v469 = vadd.f32 %v459, %v467
    %v470 = vtanh.pop %v469
    %472 = vrot.lane.b32.xlu0 %v470, 32
    %v473 = vpop.permute.xlu0 %472
    %v475 = vmul.f32 %v454, %v473
    %v477 = vrot.slane %v475, 2
    %478 = vrot.lane.b32.xlu0 %v477, 64
    %v479 = vpop.permute.xlu0 %478
    %v480 = vsel %vm69, %v479, 0
    %482 = vmatpush.msra.mxu0 0.0
    %483 = vmatpush.msra.mxu0 0.0
    %484 = vmatpush.msra.mxu0 0.0
    %485 = vmatpush.msra.mxu0 0.0
    %486 = vmatpush.msra.mxu0 0.0
    %487 = vmatpush.msra.mxu0 0.0
    %488 = vmatpush.msra.mxu0 0.0
    %489 = vmatpush.msra.mxu0 0.0
    %490 = vmatpush.msra.mxu0 0.0
    %491 = vmatpush.msra.mxu0 0.0
    %492 = vmatpush.msra.mxu0 0.0
    %493 = vmatpush.msra.mxu0 0.0
    %494 = vmatpush.msra.mxu0 %v27
    %495 = vmatpush.msra.mxu0 %v26
    %496 = vmatpush.msra.mxu0 %v25
    %497 = vmatpush.msra.mxu0 %v24
    %498 = vmatmul.f32.gmra.mxu0 %v480
    %v499 = vpop.f32.mrf.mxu0
    %v500 = vadd.f32 0.0, %v499
    %501 = vdwg.mxu0
    %v503 = vrot.slane %v500, 4
    %v505 = vadd.f32 %v67, %v503
    %v506 = vxor.u32 %v505, 2147483648
    %v507 = vmul.f32 %v506, 1.442695
    %v508 = vpow.pop %v507
    %v509 = vadd.f32 %v508, 1.0
    %v510 = vrcp.pop %v509
    %v511 = vmul.f32 %v509, %v510
    %v512 = vsub.f32 1.0, %v511
    %v513 = vmul.f32 %v510, %v512
    %v514 = vadd.f32 %v510, %v513
    %vm515 = vweird.f32 %v509
    %vm516 = vweird.f32 %v510
    %vm517 = vmor %vm515, %vm516
    %v518 = vsel %vm517, %v510, %v514
    %v519 = vand.u32 2147483647, %v509
    %vm520 = vcmp.eq.f32.partialorder %v519, 8.507059e+37
    %v521 = vand.u32 %v509, 2147483648
    %v522 = vor.u32 1.1754944e-38, %v521
    %v523 = vsel %vm520, %v522, %v518
    %v524 = vmul.f32 1.0, %v523
    %v525 = vtanh.pop %v505
    %v527 = vrot.slane %v469, 6
    %v529 = vmul.f32 %v524, %v527
    %531 = vrot.lane.b32.xlu0 %v525, 32
    %v532 = vpop.permute.xlu0 %531
    %v534 = vmul.f32 %v524, %v532
    %536 = vrot.lane.b32.xlu0 %v534, 32
    %v537 = vpop.permute.xlu0 %536
    %v539 = vadd.f32 %v529, %v537
    %v540 = vtanh.pop %v539
    %542 = vrot.lane.b32.xlu0 %v540, 32
    %v543 = vpop.permute.xlu0 %542
    %v545 = vmul.f32 %v524, %v543
    %v547 = vrot.slane %v545, 4
    %548 = vrot.lane.b32.xlu0 %v547, 64
    %v549 = vpop.permute.xlu0 %548
    %v550 = vsel %vm69, %v549, 0
    %552 = vmatpush.msra.mxu0 0.0
    %553 = vmatpush.msra.mxu0 0.0
    %554 = vmatpush.msra.mxu0 0.0
    %555 = vmatpush.msra.mxu0 0.0
    %556 = vmatpush.msra.mxu0 0.0
    %557 = vmatpush.msra.mxu0 0.0
    %558 = vmatpush.msra.mxu0 0.0
    %559 = vmatpush.msra.mxu0 0.0
    %560 = vmatpush.msra.mxu0 0.0
    %561 = vmatpush.msra.mxu0 0.0
    %562 = vmatpush.msra.mxu0 0.0
    %563 = vmatpush.msra.mxu0 0.0
    %564 = vmatpush.msra.mxu0 %v27
    %565 = vmatpush.msra.mxu0 %v26
    %566 = vmatpush.msra.mxu0 %v25
    %567 = vmatpush.msra.mxu0 %v24
    %568 = vmatmul.f32.gmra.mxu0 %v550
    %v569 = vpop.f32.mrf.mxu0
    %v570 = vadd.f32 0.0, %v569
    %571 = vdwg.mxu0
    %v573 = vrot.slane %v570, 2
    %v575 = vadd.f32 %v67, %v573
    %v576 = vxor.u32 %v575, 2147483648
    %v577 = vmul.f32 %v576, 1.442695
    %v578 = vpow.pop %v577
    %v579 = vadd.f32 %v578, 1.0
    %v580 = vrcp.pop %v579
    %v581 = vmul.f32 %v579, %v580
    %v582 = vsub.f32 1.0, %v581
    %v583 = vmul.f32 %v580, %v582
    %v584 = vadd.f32 %v580, %v583
    %vm585 = vweird.f32 %v579
    %vm586 = vweird.f32 %v580
    %vm587 = vmor %vm585, %vm586
    %v588 = vsel %vm587, %v580, %v584
    %v589 = vand.u32 2147483647, %v579
    %vm590 = vcmp.eq.f32.partialorder %v589, 8.507059e+37
    %v591 = vand.u32 %v579, 2147483648
    %v592 = vor.u32 1.1754944e-38, %v591
    %v593 = vsel %vm590, %v592, %v588
    %v594 = vmul.f32 1.0, %v593
    %v595 = vtanh.pop %v575
    %v597 = vrot.slane %v539, 6
    %v599 = vmul.f32 %v594, %v597
    %601 = vrot.lane.b32.xlu0 %v595, 32
    %v602 = vpop.permute.xlu0 %601
    %v604 = vmul.f32 %v594, %v602
    %606 = vrot.lane.b32.xlu0 %v604, 32
    %v607 = vpop.permute.xlu0 %606
    %v609 = vadd.f32 %v599, %v607
    %v610 = vtanh.pop %v609
    %612 = vrot.lane.b32.xlu0 %v610, 32
    %v613 = vpop.permute.xlu0 %612
    %v615 = vmul.f32 %v594, %v613
    %v616 = vld [vmem:[%s4] sm:$0xff]
    %v617 = vld [vmem:[%s4 + $0x8] sm:$0xff]
    %v618 = vld [vmem:[%s4 + $0x10] sm:$0xff]
    %v619 = vld [vmem:[%s4 + $0x18] sm:$0xff]
    %v620 = vld [vmem:[%s5] sm:$0x1]
    %v622 = vperm.slane %v620, 0
    %v625 = vrot.slane %v615, 6
    %626 = vrot.lane.b32.xlu0 %v625, 64
    %v627 = vpop.permute.xlu0 %626
    %v628 = vsel %vm69, %v627, 0
    %630 = vmatpush.msra.mxu0 0.0
    %631 = vmatpush.msra.mxu0 0.0
    %632 = vmatpush.msra.mxu0 0.0
    %633 = vmatpush.msra.mxu0 0.0
    %634 = vmatpush.msra.mxu0 0.0
    %635 = vmatpush.msra.mxu0 0.0
    %636 = vmatpush.msra.mxu0 0.0
    %637 = vmatpush.msra.mxu0 0.0
    %638 = vmatpush.msra.mxu0 0.0
    %639 = vmatpush.msra.mxu0 0.0
    %640 = vmatpush.msra.mxu0 0.0
    %641 = vmatpush.msra.mxu0 0.0
    %642 = vmatpush.msra.mxu0 %v619
    %643 = vmatpush.msra.mxu0 %v618
    %644 = vmatpush.msra.mxu0 %v617
    %645 = vmatpush.msra.mxu0 %v616
    %646 = vmatmul.f32.gmra.mxu0 %v628
    %v647 = vpop.f32.mrf.mxu0
    %v648 = vadd.f32 %v622, %v647
    %649 = vdwg.mxu0
    %vm650 = vcmask 58368
    %651 = vst.msk [vmem:[#allocation2] sm:$0x3] %vm650, %v648
    // Predicated region
    $region26: #{tpu_custom_call.1} parent=1 // pred_check
      _
    $region27: #{tpu_custom_call.1} parent=1 // pred_check_branch
      %653 = sbr.rel (0) target = $region29
    $region28: #{tpu_custom_call.1} parent=1 // pred_region
      %655 = vsyncadd [#allocation3], 0
      %s657 = sshll.u32 [#allocation2], 4
      %s658 = int_to_ptr.vmem [resolvable:$true] %s657
      %s659 = sshll.u32 %s6, 4
      %s660 = int_to_ptr.hbm [resolvable:$true] %s659
      %662 = dma.vmem_to_hbm [thread:$0]  %s658, 32, %s660, [#allocation3]
    $region29: #{tpu_custom_call.1} parent=1 // pred_fallthru
      _
    // Predicated region
    $region30: #{tpu_custom_call.1} parent=1 // pred_check
      _
    $region31: #{tpu_custom_call.1} parent=1 // pred_check_branch
      %664 = sbr.rel (0) target = $region33
    $region32: #{tpu_custom_call.1} parent=1 // pred_region
      %666 = dma.done [#allocation3], 32
    $region33: #{tpu_custom_call.1} parent=1 // pred_fallthru
      _
    %667 = vsyncpa [#allocation3], 1

</llo_original>
